<compile_context>
chip_gen: v7x
topology: tpu7x:2x2x1
jax: 0.10.0
libtpu: 0.0.40
codegen_flags: <defaults>
</compile_context>

<pallas_src>
import functools
import math

import jax
import jax.numpy as jnp
from jax import lax
from jax.experimental import pallas as pl
from jax.experimental.pallas import tpu as pltpu


def _cat(parts):
    """Concatenate along the lane axis, dropping zero-width pieces."""
    parts = [q for q in parts if q.shape[-1] > 0]
    if len(parts) == 1:
        return parts[0]
    return jnp.concatenate(parts, axis=-1)


def _pool_res_kernel(x_ref, prev_ref, next_ref, w_ref, b_ref, col_ref, o_ref, *, W, TH, p):
    # x_ref    : (1, C, T)   input row tile, T = TH * W (pixels on lanes)
    # prev_ref : (1, C, HL)  lane-dense block whose last p*W pixels are rows [-p, 0)
    # next_ref : (1, C, HL)  lane-dense block whose first p*W pixels are rows [TH, TH+p)
    # w_ref    : (C, 1)      1x1-conv weight (single output channel), f32, resident
    # b_ref    : (1, 1)      conv bias, f32, SMEM scalar
    # col_ref  : (1, T)      column index of every pixel (int32), resident
    # o_ref    : (1, C, T)   output tile
    T = TH * W
    pW = p * W
    t = pl.program_id(1)
    n_t = pl.num_programs(1)
    cdt = x_ref.dtype
    neg_inf = jnp.asarray(-jnp.inf, dtype=cdt)

    x = x_ref[0]                                        # (C, T)
    top = prev_ref[0][:, prev_ref.shape[2] - pW:]       # rows [-p, 0) of this tile
    bot = next_ref[0][:, :pW]                           # rows [TH, TH+p)

    # Outside the image the halo acts as PyTorch's -inf padding.
    top_cap = jnp.where(t == 0, jnp.float32(-jnp.inf), jnp.float32(jnp.inf)).astype(cdt)
    bot_cap = jnp.where(t == n_t - 1, jnp.float32(-jnp.inf), jnp.float32(jnp.inf)).astype(cdt)
    top = jnp.minimum(top, top_cap)
    bot = jnp.minimum(bot, bot_cap)

    # ---- H-direction max (window offsets -p..p); halo rows make edges exact.
    hm = x
    for dd in range(1, p + 1):
        up = _cat([top[:, (p - dd) * W:], x[:, :(TH - dd) * W]])   # value at row r - dd
        dn = _cat([x[:, dd * W:], bot[:, :dd * W]])                # value at row r + dd
        hm = jnp.maximum(hm, jnp.maximum(up, dn))

    # ---- W-direction max; reject candidates that crossed a row boundary.
    col = col_ref[...]                                   # (1, T) int32, col = pixel % W
    h = hm
    for dc in range(1, p + 1):
        plus = _cat([hm[:, dc:], hm[:, :dc]])            # value at col c + dc
        minus = _cat([hm[:, T - dc:], hm[:, :T - dc]])   # value at col c - dc
        h = jnp.maximum(h, jnp.where(col < (W - dc), plus, neg_inf))
        h = jnp.maximum(h, jnp.where(col >= dc, minus, neg_inf))

    # ---- GaussianGate: a = sigmoid(-(w . (x - h) + b)^2); gate math in f32.
    d32 = (x - h).astype(jnp.float32)
    s = jnp.sum(d32 * w_ref[...], axis=0, keepdims=True) + b_ref[0, 0]   # (1, T) f32
    a = jax.nn.sigmoid(-(s * s)).astype(cdt)

    # (a - 1) * x + a * h  ==  a * (x + h) - x  (one fewer VPU op per element)
    o_ref[0] = (a * (x + h) - x).astype(o_ref.dtype)


def _choose_tile_rows(H, W, C, p, itemsize, halo_lanes, target_bytes=2 * 1024 * 1024):
    valid = []
    for th in range(1, H + 1):
        if H % th or th % p:
            continue
        T = th * W
        if T % 128 or T % halo_lanes:
            continue
        valid.append(th)
    if not valid:
        return None
    fitting = [th for th in valid if C * th * W * itemsize <= target_bytes]
    multi = [th for th in fitting if H // th >= 2]   # >=2 row tiles shards both v7x cores
    if multi:
        return max(multi)
    if fitting:
        return max(fitting)
    return min(valid)


def pool_res(x_nchw, weight, bias, *, kernel_size, padding, stride=1,
             tile_rows=None, vmem_limit_bytes=32 * 1024 * 1024):
    """PoolRes forward: MaxPool2d(k, stride=1, pad=p) + GaussianGate (groups=1)."""
    assert stride == 1, "PoolRes uses stride=1"
    assert 2 * padding == kernel_size - 1, "same-size pooling required by x - pool(x)"
    assert padding >= 1, "kernel_size == 1 pooling is a degenerate no-op"
    p = padding
    B, C, H, W = x_nchw.shape
    HW = H * W
    # TODO(synk): pad the pixel axis when H*W is not a multiple of 128 (e.g. 7x7 maps).
    assert HW % 128 == 0, "pixel axis must be lane-dense (H*W % 128 == 0)"

    HL = 128 * ((p * W + 127) // 128)            # lane width of one halo block
    itemsize = jnp.dtype(x_nchw.dtype).itemsize
    if tile_rows is None:
        tile_rows = _choose_tile_rows(H, W, C, p, itemsize, HL)
    assert tile_rows is not None, "no valid row-tile size for this (H, W, padding)"
    TH = tile_rows
    T = TH * W
    assert H % TH == 0 and TH % p == 0 and T % 128 == 0 and T % HL == 0

    n_t = H // TH
    nb = T // HL                                 # halo blocks per row tile
    n_hb = HW // HL                              # halo blocks per image

    x_flat = x_nchw.reshape(B, C, HW)            # free reshape of NCHW
    w_col = weight.reshape(C, 1).astype(jnp.float32)
    b_smem = bias.reshape(1, 1).astype(jnp.float32)
    col_idx = (jnp.arange(T, dtype=jnp.int32) % W).reshape(1, T)

    kernel = functools.partial(_pool_res_kernel, W=W, TH=TH, p=p)

    out_flat = pl.pallas_call(
        kernel,
        out_shape=jax.ShapeDtypeStruct((B, C, HW), x_nchw.dtype),
        grid_spec=pltpu.PrefetchScalarGridSpec(
            num_scalar_prefetch=0,
            grid=(B, n_t),
            in_specs=[
                # row tile of one image
                pl.BlockSpec((1, C, T), lambda b, t: (b, 0, t)),
                # halo block just above the tile (clamped; top edge filled in-kernel)
                pl.BlockSpec((1, C, HL),
                             lambda b, t, nb=nb: (b, 0, jnp.maximum(t * nb - 1, 0))),
                # halo block just below the tile (clamped; bottom edge filled in-kernel)
                pl.BlockSpec((1, C, HL),
                             lambda b, t, nb=nb, m=n_hb - 1: (b, 0, jnp.minimum((t + 1) * nb, m))),
                # resident 1x1-conv weight
                pl.BlockSpec((C, 1), lambda b, t: (0, 0)),
                # conv bias scalar in SMEM
                pl.BlockSpec(memory_space=pltpu.MemorySpace.SMEM),
                # resident column-index vector
                pl.BlockSpec((1, T), lambda b, t: (0, 0)),
            ],
            out_specs=pl.BlockSpec((1, C, T), lambda b, t: (b, 0, t)),
        ),
        compiler_params=pltpu.CompilerParams(
            dimension_semantics=("parallel", "parallel"),
            vmem_limit_bytes=vmem_limit_bytes,
        ),
    )(x_flat, x_flat, x_flat, w_col, b_smem, col_idx)

    return out_flat.reshape(B, C, H, W)


def _reference(x, weight, bias, *, kernel_size, padding):
    # Pure-JAX reference of the PyTorch forward (f32 math).
    k, p = kernel_size, padding
    xf = x.astype(jnp.float32)
    h = lax.reduce_window(
        xf, -jnp.inf, lax.max,
        window_dimensions=(1, 1, k, k),
        window_strides=(1, 1, 1, 1),
        padding=((0, 0), (0, 0), (p, p), (p, p)))
    s = jnp.einsum("bchw,c->bhw", xf - h, weight.astype(jnp.float32)) + bias.astype(jnp.float32)
    a = jax.nn.sigmoid(-(s * s))[:, None]
    return ((a - 1.0) * xf + a * h).astype(x.dtype)


if __name__ == "__main__":
    def run_case(key, B, C, H, W, k, p, dtype, tile_rows, tol):
        kx, kw, kb = jax.random.split(key, 3)
        x = jax.random.normal(kx, (B, C, H, W), dtype=jnp.float32).astype(dtype)
        bound = 1.0 / math.sqrt(C)
        weight = jax.random.uniform(kw, (C,), minval=-bound, maxval=bound, dtype=jnp.float32)
        bias = jax.random.uniform(kb, (), minval=-bound, maxval=bound, dtype=jnp.float32)

        out = pool_res(x, weight, bias, kernel_size=k, padding=p, tile_rows=tile_rows)
        out = jax.block_until_ready(out)

        ref = _reference(x, weight, bias, kernel_size=k, padding=p)
        assert out.shape == (B, C, H, W) and out.dtype == x.dtype
        err = float(jnp.max(jnp.abs(out.astype(jnp.float32) - ref.astype(jnp.float32))))
        assert err < tol, f"max abs error {err} (shape {(B, C, H, W)}, dtype {dtype})"

    key = jax.random.PRNGKey(0)
    k0, k1, k2 = jax.random.split(key, 3)

    # Two row tiles: exercises cross-tile halos and both image boundaries (f32).
    run_case(k0, B=2, C=4, H=16, W=16, k=3, p=1, dtype=jnp.float32, tile_rows=8, tol=1e-4)
    # Four row tiles: interior tiles use real top AND bottom halos (f32).
    run_case(k1, B=1, C=8, H=32, W=16, k=3, p=1, dtype=jnp.float32, tile_rows=8, tol=1e-4)
    # bf16 path: pool/blend stay bf16 (v6e/v7x perf path), gate math in f32.
    run_case(k2, B=1, C=4, H=16, W=16, k=3, p=1, dtype=jnp.bfloat16, tile_rows=None, tol=0.25)

    print("KERNEL_OK")
</pallas_src>

<mosaic_0001>
module attributes {stable_mosaic.version = 11 : i64} {
  func.func @_pool_res_kernel(%arg0: i32, %arg1: i32, %arg2: memref<1x4x128xf32, #tpu.memory_space<vmem>>, %arg3: memref<1x4x128xf32, #tpu.memory_space<vmem>>, %arg4: memref<1x4x128xf32, #tpu.memory_space<vmem>>, %arg5: memref<4x1xf32, #tpu.memory_space<vmem>>, %arg6: memref<1x1xf32, #tpu.memory_space<smem>>, %arg7: memref<1x128xi32, #tpu.memory_space<vmem>>, %arg8: memref<1x4x128xf32, #tpu.memory_space<vmem>>) attributes {dimension_semantics = [#tpu.dimension_semantics<parallel>, #tpu.dimension_semantics<parallel>], iteration_bounds = array<i64: 2, 2>, scalar_prefetch = 0 : i64, scratch_operands = 0 : i64, tpu.core_type = #tpu.core_type<tc>, window_params = [{transform_indices = @transform_0, window_bounds = array<i64: 1, 4, 128>}, {transform_indices = @transform_1, window_bounds = array<i64: 1, 4, 128>}, {transform_indices = @transform_2, window_bounds = array<i64: 1, 4, 128>}, {pipeline_mode = #tpu.pipeline_mode<synchronous>, transform_indices = @transform_3, window_bounds = array<i64: 4, 1>}, {transform_indices = @transform_4, window_bounds = array<i64: 1, 1>}, {pipeline_mode = #tpu.pipeline_mode<synchronous>, transform_indices = @transform_5, window_bounds = array<i64: 1, 128>}, {transform_indices = @transform_6, window_bounds = array<i64: 1, 4, 128>}]} {
    %c0 = arith.constant 0 : index
    %c0_0 = arith.constant 0 : index
    %c0_1 = arith.constant 0 : index
    %0 = vector.load %arg2[%c0, %c0_0, %c0_1] : memref<1x4x128xf32, #tpu.memory_space<vmem>>, vector<1x4x128xf32>
    %1 = vector.shape_cast %0 : vector<1x4x128xf32> to vector<4x128xf32>
    %c0_2 = arith.constant 0 : index
    %c0_3 = arith.constant 0 : index
    %c0_4 = arith.constant 0 : index
    %2 = vector.load %arg3[%c0_2, %c0_3, %c0_4] : memref<1x4x128xf32, #tpu.memory_space<vmem>>, vector<1x4x128xf32>
    %3 = vector.shape_cast %2 : vector<1x4x128xf32> to vector<4x128xf32>
    %4 = vector.extract_strided_slice %3 {offsets = [0, 112], sizes = [4, 16], strides = [1, 1]} : vector<4x128xf32> to vector<4x16xf32>
    %c0_5 = arith.constant 0 : index
    %c0_6 = arith.constant 0 : index
    %c0_7 = arith.constant 0 : index
    %5 = vector.load %arg4[%c0_5, %c0_6, %c0_7] : memref<1x4x128xf32, #tpu.memory_space<vmem>>, vector<1x4x128xf32>
    %6 = vector.shape_cast %5 : vector<1x4x128xf32> to vector<4x128xf32>
    %7 = vector.extract_strided_slice %6 {offsets = [0, 0], sizes = [4, 16], strides = [1, 1]} : vector<4x128xf32> to vector<4x16xf32>
    %c0_i32 = arith.constant 0 : i32
    %8 = arith.cmpi eq, %arg1, %c0_i32 : i32
    %cst = arith.constant 0xFF800000 : f32
    %cst_8 = arith.constant 0x7F800000 : f32
    %9 = arith.select %8, %cst, %cst_8 : f32
    %c1_i32 = arith.constant 1 : i32
    %10 = arith.cmpi eq, %arg1, %c1_i32 : i32
    %cst_9 = arith.constant 0xFF800000 : f32
    %cst_10 = arith.constant 0x7F800000 : f32
    %11 = arith.select %10, %cst_9, %cst_10 : f32
    %12 = vector.broadcast %9 : f32 to vector<4x16xf32>
    %13 = arith.minimumf %4, %12 : vector<4x16xf32>
    %14 = vector.broadcast %11 : f32 to vector<4x16xf32>
    %15 = arith.minimumf %7, %14 : vector<4x16xf32>
    %16 = vector.extract_strided_slice %1 {offsets = [0, 0], sizes = [4, 112], strides = [1, 1]} : vector<4x128xf32> to vector<4x112xf32>
    %17 = tpu.concatenate %13, %16 in 1 : vector<4x16xf32>, vector<4x112xf32> -> vector<4x128xf32>
    %18 = vector.extract_strided_slice %1 {offsets = [0, 16], sizes = [4, 112], strides = [1, 1]} : vector<4x128xf32> to vector<4x112xf32>
    %19 = tpu.concatenate %18, %15 in 1 : vector<4x112xf32>, vector<4x16xf32> -> vector<4x128xf32>
    %20 = arith.maximumf %17, %19 : vector<4x128xf32>
    %21 = arith.maximumf %1, %20 : vector<4x128xf32>
    %c0_11 = arith.constant 0 : index
    %c0_12 = arith.constant 0 : index
    %22 = vector.load %arg7[%c0_11, %c0_12] : memref<1x128xi32, #tpu.memory_space<vmem>>, vector<1x128xi32>
    %23 = vector.extract_strided_slice %21 {offsets = [0, 1], sizes = [4, 127], strides = [1, 1]} : vector<4x128xf32> to vector<4x127xf32>
    %24 = vector.extract_strided_slice %21 {offsets = [0, 0], sizes = [4, 1], strides = [1, 1]} : vector<4x128xf32> to vector<4x1xf32>
    %25 = tpu.concatenate %23, %24 in 1 : vector<4x127xf32>, vector<4x1xf32> -> vector<4x128xf32>
    %26 = vector.extract_strided_slice %21 {offsets = [0, 127], sizes = [4, 1], strides = [1, 1]} : vector<4x128xf32> to vector<4x1xf32>
    %27 = vector.extract_strided_slice %21 {offsets = [0, 0], sizes = [4, 127], strides = [1, 1]} : vector<4x128xf32> to vector<4x127xf32>
    %28 = tpu.concatenate %26, %27 in 1 : vector<4x1xf32>, vector<4x127xf32> -> vector<4x128xf32>
    %c15_i32 = arith.constant 15 : i32
    %29 = vector.broadcast %c15_i32 : i32 to vector<1x128xi32>
    %30 = arith.cmpi slt, %22, %29 : vector<1x128xi32>
    %cst_13 = arith.constant 0xFF800000 : f32
    %31 = vector.shape_cast %30 : vector<1x128xi1> to vector<1x128xi1>
    %32 = vector.broadcast %31 : vector<1x128xi1> to vector<4x128xi1>
    %33 = vector.broadcast %cst_13 : f32 to vector<4x128xf32>
    %34 = arith.select %32, %25, %33 : vector<4x128xi1>, vector<4x128xf32>
    %35 = arith.maximumf %21, %34 : vector<4x128xf32>
    %c1_i32_14 = arith.constant 1 : i32
    %36 = vector.broadcast %c1_i32_14 : i32 to vector<1x128xi32>
    %37 = arith.cmpi sge, %22, %36 : vector<1x128xi32>
    %cst_15 = arith.constant 0xFF800000 : f32
    %38 = vector.shape_cast %37 : vector<1x128xi1> to vector<1x128xi1>
    %39 = vector.broadcast %38 : vector<1x128xi1> to vector<4x128xi1>
    %40 = vector.broadcast %cst_15 : f32 to vector<4x128xf32>
    %41 = arith.select %39, %28, %40 : vector<4x128xi1>, vector<4x128xf32>
    %42 = arith.maximumf %35, %41 : vector<4x128xf32>
    %43 = arith.subf %1, %42 : vector<4x128xf32>
    %c0_16 = arith.constant 0 : index
    %c0_17 = arith.constant 0 : index
    %44 = vector.load %arg5[%c0_16, %c0_17] : memref<4x1xf32, #tpu.memory_space<vmem>>, vector<4x1xf32>
    %45 = vector.broadcast %44 : vector<4x1xf32> to vector<4x128xf32>
    %46 = arith.mulf %43, %45 : vector<4x128xf32>
    %cst_18 = arith.constant dense<0.000000e+00> : vector<128xf32>
    %47 = vector.multi_reduction <add>, %46, %cst_18 [0] : vector<4x128xf32> to vector<128xf32>
    %48 = vector.shape_cast %47 : vector<128xf32> to vector<1x128xf32>
    %c0_19 = arith.constant 0 : index
    %c0_20 = arith.constant 0 : index
    %49 = memref.load %arg6[%c0_19, %c0_20] : memref<1x1xf32, #tpu.memory_space<smem>>
    %50 = vector.broadcast %49 : f32 to vector<1x128xf32>
    %51 = arith.addf %48, %50 : vector<1x128xf32>
    %52 = arith.mulf %51, %51 : vector<1x128xf32>
    %cst_21 = arith.constant 0.000000e+00 : f32
    %53 = vector.broadcast %cst_21 : f32 to vector<1x128xf32>
    %54 = arith.subf %53, %52 : vector<1x128xf32>
    %55 = arith.negf %54 : vector<1x128xf32>
    %56 = math.exp %55 : vector<1x128xf32>
    %cst_22 = arith.constant 1.000000e+00 : f32
    %57 = vector.broadcast %cst_22 : f32 to vector<1x128xf32>
    %58 = arith.addf %57, %56 : vector<1x128xf32>
    %59 = arith.divf %57, %58 : vector<1x128xf32>
    %60 = arith.addf %1, %42 : vector<4x128xf32>
    %61 = vector.broadcast %59 : vector<1x128xf32> to vector<4x128xf32>
    %62 = arith.mulf %61, %60 : vector<4x128xf32>
    %63 = arith.subf %62, %1 : vector<4x128xf32>
    %c0_23 = arith.constant 0 : index
    %c0_24 = arith.constant 0 : index
    %c0_25 = arith.constant 0 : index
    %64 = vector.load %arg8[%c0_23, %c0_24, %c0_25] : memref<1x4x128xf32, #tpu.memory_space<vmem>>, vector<1x4x128xf32>
    %65 = vector.shape_cast %64 : vector<1x4x128xf32> to vector<4x128xf32>
    %66 = vector.shape_cast %63 : vector<4x128xf32> to vector<1x4x128xf32>
    tpu.vector_store %arg8[%c0_23, %c0_24, %c0_25], %66 {strides = array<i32>} : memref<1x4x128xf32, #tpu.memory_space<vmem>>, vector<1x4x128xf32>,
    return
  }
  func.func @transform_0(%arg0: i32, %arg1: i32) -> (i32, i32, i32) {
    %c0_i32 = arith.constant 0 : i32
    %c0_i32_0 = arith.constant 0 : i32
    return %arg0, %c0_i32, %arg1 : i32, i32, i32
  }
  func.func @transform_1(%arg0: i32, %arg1: i32) -> (i32, i32, i32) {
    %c1_i32 = arith.constant 1 : i32
    %0 = arith.muli %arg1, %c1_i32 : i32
    %c1_i32_0 = arith.constant 1 : i32
    %1 = arith.subi %0, %c1_i32_0 : i32
    %c0_i32 = arith.constant 0 : i32
    %2 = arith.maxsi %1, %c0_i32 : i32
    %c0_i32_1 = arith.constant 0 : i32
    %c0_i32_2 = arith.constant 0 : i32
    return %arg0, %c0_i32_1, %2 : i32, i32, i32
  }
  func.func @transform_2(%arg0: i32, %arg1: i32) -> (i32, i32, i32) {
    %c1_i32 = arith.constant 1 : i32
    %0 = arith.addi %arg1, %c1_i32 : i32
    %c1_i32_0 = arith.constant 1 : i32
    %1 = arith.muli %0, %c1_i32_0 : i32
    %c1_i32_1 = arith.constant 1 : i32
    %2 = arith.minsi %1, %c1_i32_1 : i32
    %c0_i32 = arith.constant 0 : i32
    %c0_i32_2 = arith.constant 0 : i32
    return %arg0, %c0_i32, %2 : i32, i32, i32
  }
  func.func @transform_3(%arg0: i32, %arg1: i32) -> (i32, i32) {
    %c0_i32 = arith.constant 0 : i32
    %c0_i32_0 = arith.constant 0 : i32
    %c0_i32_1 = arith.constant 0 : i32
    return %c0_i32, %c0_i32_0 : i32, i32
  }
  func.func @transform_4(%arg0: i32, %arg1: i32) -> (i32, i32) {
    %c0_i32 = arith.constant 0 : i32
    %c0_i32_0 = arith.constant 0 : i32
    %c0_i32_1 = arith.constant 0 : i32
    return %c0_i32, %c0_i32_0 : i32, i32
  }
  func.func @transform_5(%arg0: i32, %arg1: i32) -> (i32, i32) {
    %c0_i32 = arith.constant 0 : i32
    %c0_i32_0 = arith.constant 0 : i32
    %c0_i32_1 = arith.constant 0 : i32
    return %c0_i32, %c0_i32_0 : i32, i32
  }
  func.func @transform_6(%arg0: i32, %arg1: i32) -> (i32, i32, i32) {
    %c0_i32 = arith.constant 0 : i32
    %c0_i32_0 = arith.constant 0 : i32
    return %arg0, %c0_i32, %arg1 : i32, i32, i32
  }
}

</mosaic_0001>

<llo_original>
// kernel: tpu_custom_call.1
$region0: #{tpu_custom_call.1}
  #allocation0 [shape = 'u32[]', space=smem, size = 0x4, offset = 0x4, fixed_abs, tag = 'smem constant byte address 0x4 - core index']
  #allocation1 [shape = 'u32[144,128]{1,0:T(1,128)}', space=vmem, size = 0x12000, scoped, tag = 'internal scratch']
  #allocation2 [shape = 'f32[1,1]{1,0:T(1,128)S(6)}', space=smem, size = 0x200, scoped, tag = 'scoped memory for tpu_custom_call.1']
  %s0 = inlined_call_operand.hbm [shape: f32[2,4,256], index: 0, kind: input, shape index: {}]
  %s1 = inlined_call_operand.hbm [shape: f32[2,4,256], index: 1, kind: input, shape index: {}]
  %s2 = inlined_call_operand.vmem [shape: f32[2,4,256], index: 2, kind: input, shape index: {}]
  %s3 = inlined_call_operand.vmem [shape: f32[4,1], index: 3, kind: input, shape index: {}]
  %s4 = inlined_call_operand.<no memory space> [shape: f32[1,1], index: 4, kind: input, shape index: {}]
  %s5 = inlined_call_operand.vmem [shape: s32[1,128], index: 5, kind: input, shape index: {}]
  %s6 = inlined_call_operand.hbm [shape: f32[2,4,256], index: 6, kind: output, shape index: {}]
  %s7 = sld [smem:[#allocation0]]
  $region65: #{tpu_custom_call.1} parent=0
    _
  %s9 = ssub.s32 1, %s7
  %s10 = scalar_select 0, %s9, %s7
  %11 = sst [smem:[#allocation2]] %s4
  $region1: #{tpu_custom_call.1} parent=0
    #allocation3 [shape = 'u8[4096]{0}', space=vmem, size = 0x1000, scoped, tag = 'input window, operand 0']
    #allocation4 [shape = 's32[2]{0}', space=sflag, size = 0x8, scoped, tag = 'scoped memory for tpu_custom_call.1']
    #allocation5 [shape = 's32[2]{0}', space=sflag, size = 0x8, scoped, tag = 'scoped memory for tpu_custom_call.1']
    #allocation6 [shape = 'u8[4096]{0}', space=vmem, size = 0x1000, scoped, tag = 'input window, operand 1']
    #allocation7 [shape = 's32[2]{0}', space=sflag, size = 0x8, scoped, tag = 'scoped memory for tpu_custom_call.1']
    #allocation8 [shape = 'u8[4096]{0}', space=vmem, size = 0x1000, scoped, tag = 'output window, operand 0']
    %12 = vsyncpa [#allocation4], 0
    %s13 = scalar_lea.sflag [#allocation4], 1
    %14 = vsyncpa %s13, 0
    %15 = vsyncpa [#allocation7], 0
    %s16 = scalar_lea.sflag [#allocation7], 1
    %17 = vsyncpa %s16, 0
    %18 = vsyncpa [#allocation5], 0
    %s19 = scalar_lea.sflag [#allocation5], 1
    %20 = vsyncpa %s19, 0
    loop: start=0, step=1, limit=6
    $region2: #{tpu_custom_call.1} parent=1 // loop_pre_header
      _
    $region3: #{tpu_custom_call.1} parent=1 // loop_header
      %s22 = sphi 0, %s26
      %p23 = scmp.ge.s32.totalorder %s22, 6
      %s29 = sphi 0, %s41
      %s30 = sphi 0, %s37
      %s31 = sphi 0, %s29
      %s32 = sphi 0, %s30
      %s33 = sphi 0, %s31
      %s34 = sphi 0, %s32
      %s46 = sphi 0, %s48
      %s49 = sphi 0, %s46
      %s50 = sphi 0, %s49
      %s66 = sphi 0, %s50
      %s80 = sphi 0, %s82
      %s83 = sphi 0, %s80
      %s84 = sphi 0, %s83
      %s100 = sphi 0, %s84
      %s114 = sphi 0, %s116
      %s117 = sphi 0, %s114
      %s118 = sphi 0, %s117
      %s134 = sphi 0, %s118
      %s138 = sphi 0, %s138
      %s140 = sphi 0, %s138
      %s141 = sphi 0, %s140
      %s155 = sphi 0, %s141
      %s159 = sphi 0, %s159
      %s161 = sphi 0, %s159
      %s162 = sphi 0, %s161
      %s176 = sphi 0, %s162
      %s180 = sphi 0, %s180
      %s182 = sphi 0, %s180
      %s183 = sphi 0, %s182
      %s197 = sphi 0, %s183
      %s205 = sphi 0, %s207
      %s208 = sphi 0, %s205
      %s209 = sphi 0, %s208
      %s225 = sphi 0, %s209
    $region4: #{tpu_custom_call.1} parent=1 // loop_header_branch
      %25 = sbr.rel (%p23) target = $region8
    $region5: #{tpu_custom_call.1} parent=1 // loop_body
      %s27 = ssub.s32 %s22, 1
      %s28 = ssub.s32 %s22, 2
      %s35 = sadd.s32 1, %s30
      %p36 = scmp.ge.s32.totalorder %s35, 2
      %s37 = scalar_select %p36, 0, %s35
      %s38 = sadd.s32 1, %s29
      %s39 = scalar_select %p36, %s38, %s29
      %p40 = scmp.ge.s32.totalorder %s39, 2
      %s41 = scalar_select %p40, 0, %s39
      %s42 = ssub.s32 %s29, %s41
      %s43 = ssub.s32 %s30, %s37
      %s44 = sor.u32 %s42, %s43
      %p45 = scmp.eq.s32.totalorder %s44, 0
      %s47 = sadd.s32 %s46, 1
      %s48 = scalar_select %p45, %s46, %s47
      %p51 = pneg %p45
      %p52 = scmp.eq.s32.totalorder %s22, 3
      %p53 = por %p51, %p52
      %p54 = scmp.ne.s32.totalorder %s46, %s49
      %p55 = scmp.eq.s32.totalorder %s22, 0
      %p56 = por %p54, %p55
      %p57 = scmp.ne.s32.totalorder %s46, %s49
      %p58 = scmp.eq.s32.totalorder %s27, 3
      %p59 = por %p57, %p58
      %p60 = scmp.ne.s32.totalorder %s49, %s50
      %p61 = scmp.eq.s32.totalorder %s27, 0
      %p62 = por %p60, %p61
      %p63 = scmp.ne.s32.totalorder %s49, %s50
      %p64 = scmp.eq.s32.totalorder %s28, 3
      %p65 = por %p63, %p64
      %p67 = scmp.ne.s32.totalorder %s50, %s66
      %p68 = scmp.eq.s32.totalorder %s28, 0
      %p69 = por %p67, %p68
      %s70 = ssub.s32 %s30, 1
      %p71 = scmp.gt.s32.totalorder %s70, 0
      %s72 = scalar_select %p71, %s70, 0
      %s73 = ssub.s32 %s37, 1
      %p74 = scmp.gt.s32.totalorder %s73, 0
      %s75 = scalar_select %p74, %s73, 0
      %s76 = ssub.s32 %s29, %s41
      %s77 = ssub.s32 %s72, %s75
      %s78 = sor.u32 %s76, %s77
      %p79 = scmp.eq.s32.totalorder %s78, 0
      %s81 = sadd.s32 %s80, 1
      %s82 = scalar_select %p79, %s80, %s81
      %p85 = pneg %p79
      %p86 = scmp.eq.s32.totalorder %s22, 3
      %p87 = por %p85, %p86
      %p88 = scmp.ne.s32.totalorder %s80, %s83
      %p89 = scmp.eq.s32.totalorder %s22, 0
      %p90 = por %p88, %p89
      %p91 = scmp.ne.s32.totalorder %s80, %s83
      %p92 = scmp.eq.s32.totalorder %s27, 3
      %p93 = por %p91, %p92
      %p94 = scmp.ne.s32.totalorder %s83, %s84
      %p95 = scmp.eq.s32.totalorder %s27, 0
      %p96 = por %p94, %p95
      %p97 = scmp.ne.s32.totalorder %s83, %s84
      %p98 = scmp.eq.s32.totalorder %s28, 3
      %p99 = por %p97, %p98
      %p101 = scmp.ne.s32.totalorder %s84, %s100
      %p102 = scmp.eq.s32.totalorder %s28, 0
      %p103 = por %p101, %p102
      %s104 = sadd.s32 %s30, 1
      %p105 = scmp.lt.s32.totalorder %s104, 1
      %s106 = scalar_select %p105, %s104, 1
      %s107 = sadd.s32 %s37, 1
      %p108 = scmp.lt.s32.totalorder %s107, 1
      %s109 = scalar_select %p108, %s107, 1
      %s110 = ssub.s32 %s29, %s41
      %s111 = ssub.s32 %s106, %s109
      %s112 = sor.u32 %s110, %s111
      %p113 = scmp.eq.s32.totalorder %s112, 0
      %s115 = sadd.s32 %s114, 1
      %s116 = scalar_select %p113, %s114, %s115
      %p119 = pneg %p113
      %p120 = scmp.eq.s32.totalorder %s22, 3
      %p121 = por %p119, %p120
      %p122 = scmp.ne.s32.totalorder %s114, %s117
      %p123 = scmp.eq.s32.totalorder %s22, 0
      %p124 = por %p122, %p123
      %p125 = scmp.ne.s32.totalorder %s114, %s117
      %p126 = scmp.eq.s32.totalorder %s27, 3
      %p127 = por %p125, %p126
      %p128 = scmp.ne.s32.totalorder %s117, %s118
      %p129 = scmp.eq.s32.totalorder %s27, 0
      %p130 = por %p128, %p129
      %p131 = scmp.ne.s32.totalorder %s117, %s118
      %p132 = scmp.eq.s32.totalorder %s28, 3
      %p133 = por %p131, %p132
      %p135 = scmp.ne.s32.totalorder %s118, %s134
      %p136 = scmp.eq.s32.totalorder %s28, 0
      %p137 = por %p135, %p136
      %s139 = sadd.s32 %s138, 1
      %p142 = scmp.eq.s32.totalorder %s22, 3
      %p143 = scmp.ne.s32.totalorder %s138, %s140
      %p144 = scmp.eq.s32.totalorder %s22, 0
      %p145 = por %p143, %p144
      %p146 = scmp.ne.s32.totalorder %s138, %s140
      %p147 = scmp.eq.s32.totalorder %s27, 3
      %p148 = por %p146, %p147
      %p149 = scmp.ne.s32.totalorder %s140, %s141
      %p150 = scmp.eq.s32.totalorder %s27, 0
      %p151 = por %p149, %p150
      %p152 = scmp.ne.s32.totalorder %s140, %s141
      %p153 = scmp.eq.s32.totalorder %s28, 3
      %p154 = por %p152, %p153
      %p156 = scmp.ne.s32.totalorder %s141, %s155
      %p157 = scmp.eq.s32.totalorder %s28, 0
      %p158 = por %p156, %p157
      %s160 = sadd.s32 %s159, 1
      %p163 = scmp.eq.s32.totalorder %s22, 3
      %p164 = scmp.ne.s32.totalorder %s159, %s161
      %p165 = scmp.eq.s32.totalorder %s22, 0
      %p166 = por %p164, %p165
      %p167 = scmp.ne.s32.totalorder %s159, %s161
      %p168 = scmp.eq.s32.totalorder %s27, 3
      %p169 = por %p167, %p168
      %p170 = scmp.ne.s32.totalorder %s161, %s162
      %p171 = scmp.eq.s32.totalorder %s27, 0
      %p172 = por %p170, %p171
      %p173 = scmp.ne.s32.totalorder %s161, %s162
      %p174 = scmp.eq.s32.totalorder %s28, 3
      %p175 = por %p173, %p174
      %p177 = scmp.ne.s32.totalorder %s162, %s176
      %p178 = scmp.eq.s32.totalorder %s28, 0
      %p179 = por %p177, %p178
      %s181 = sadd.s32 %s180, 1
      %p184 = scmp.eq.s32.totalorder %s22, 3
      %p185 = scmp.ne.s32.totalorder %s180, %s182
      %p186 = scmp.eq.s32.totalorder %s22, 0
      %p187 = por %p185, %p186
      %p188 = scmp.ne.s32.totalorder %s180, %s182
      %p189 = scmp.eq.s32.totalorder %s27, 3
      %p190 = por %p188, %p189
      %p191 = scmp.ne.s32.totalorder %s182, %s183
      %p192 = scmp.eq.s32.totalorder %s27, 0
      %p193 = por %p191, %p192
      %p194 = scmp.ne.s32.totalorder %s182, %s183
      %p195 = scmp.eq.s32.totalorder %s28, 3
      %p196 = por %p194, %p195
      %p198 = scmp.ne.s32.totalorder %s183, %s197
      %p199 = scmp.eq.s32.totalorder %s28, 0
      %p200 = por %p198, %p199
      %s201 = ssub.s32 %s29, %s41
      %s202 = ssub.s32 %s30, %s37
      %s203 = sor.u32 %s201, %s202
      %p204 = scmp.eq.s32.totalorder %s203, 0
      %s206 = sadd.s32 %s205, 1
      %s207 = scalar_select %p204, %s205, %s206
      %p210 = pneg %p204
      %p211 = scmp.eq.s32.totalorder %s22, 3
      %p212 = por %p210, %p211
      %p213 = scmp.ne.s32.totalorder %s205, %s208
      %p214 = scmp.eq.s32.totalorder %s22, 0
      %p215 = por %p213, %p214
      %p216 = scmp.ne.s32.totalorder %s205, %s208
      %p217 = scmp.eq.s32.totalorder %s27, 3
      %p218 = por %p216, %p217
      %p219 = scmp.ne.s32.totalorder %s208, %s209
      %p220 = scmp.eq.s32.totalorder %s27, 0
      %p221 = por %p219, %p220
      %p222 = scmp.ne.s32.totalorder %s208, %s209
      %p223 = scmp.eq.s32.totalorder %s28, 3
      %p224 = por %p222, %p223
      %p226 = scmp.ne.s32.totalorder %s209, %s225
      %p227 = scmp.eq.s32.totalorder %s28, 0
      %p228 = por %p226, %p227
      %p229 = scmp.le.s32.totalorder 1, %s22
      %p230 = scmp.lt.s32.totalorder %s22, 5
      %p231 = pnand %p229, %p230
      %p232 = pneg %p231
      // Predicated region
      $region9: #{tpu_custom_call.1} parent=5 // pred_check
        _
      $region10: #{tpu_custom_call.1} parent=5 // pred_check_branch
        %234 = sbr.rel (%p231) target = $region12
      $region11: #{tpu_custom_call.1} parent=5 // pred_region
        %s235 = ssub.s32 %s22, 1
        // Predicated region
        $region13: #{tpu_custom_call.1} parent=11 // pred_check
          %p236 = pneg %p151
        $region14: #{tpu_custom_call.1} parent=11 // pred_check_branch
          %238 = sbr.rel (%p236) target = $region16
        $region15: #{tpu_custom_call.1} parent=11 // pred_region
          _
        $region16: #{tpu_custom_call.1} parent=11 // pred_fallthru
          _
        // Predicated region
        $region17: #{tpu_custom_call.1} parent=11 // pred_check
          %p239 = pneg %p172
        $region18: #{tpu_custom_call.1} parent=11 // pred_check_branch
          %241 = sbr.rel (%p239) target = $region20
        $region19: #{tpu_custom_call.1} parent=11 // pred_region
          _
        $region20: #{tpu_custom_call.1} parent=11 // pred_fallthru
          _
        // Predicated region
        $region21: #{tpu_custom_call.1} parent=11 // pred_check
          %p242 = pneg %p193
        $region22: #{tpu_custom_call.1} parent=11 // pred_check_branch
          %244 = sbr.rel (%p242) target = $region24
        $region23: #{tpu_custom_call.1} parent=11 // pred_region
          _
        $region24: #{tpu_custom_call.1} parent=11 // pred_fallthru
          _
      $region12: #{tpu_custom_call.1} parent=5 // pred_fallthru
        _
      %p245 = scmp.lt.s32.totalorder %s22, 4
      // Predicated region
      $region25: #{tpu_custom_call.1} parent=5 // pred_check
        %p246 = pneg %p245
      $region26: #{tpu_custom_call.1} parent=5 // pred_check_branch
        %248 = sbr.rel (%p246) target = $region28
      $region27: #{tpu_custom_call.1} parent=5 // pred_region
        // Predicated region
        $region29: #{tpu_custom_call.1} parent=27 // pred_check
          %p249 = pneg %p56
        $region30: #{tpu_custom_call.1} parent=27 // pred_check_branch
          %251 = sbr.rel (%p249) target = $region32
        $region31: #{tpu_custom_call.1} parent=27 // pred_region
          %s252 = sand.u32 %s46, 1
          %s253 = scalar_lea.sflag [#allocation4], %s252
          %s254 = sand.u32 %s46, 1
          %s255 = smul.addr %s254, 4
          %s256 = scalar_lea.vmem [#allocation3], %s255
          %s258 = ssub.s32 64, 64
          %259 = vsyncadd %s253, %s258
          %s260 = smul.addr %s29, 2
          %s261 = sadd.s32 %s30, %s260
          %s262 = smul.addr %s261, 64
          %s263 = scalar_lea.hbm %s0, %s262
          %s265 = sshll.u32 %s256, 4
          %s266 = int_to_ptr.vmem [resolvable:$true] %s265
          %268 = dma.hbm_to_vmem [thread:$0]  %s263, 64, %s266, %s253
        $region32: #{tpu_custom_call.1} parent=27 // pred_fallthru
          _
        // Predicated region
        $region33: #{tpu_custom_call.1} parent=27 // pred_check
          %p269 = pneg %p90
        $region34: #{tpu_custom_call.1} parent=27 // pred_check_branch
          %271 = sbr.rel (%p269) target = $region36
        $region35: #{tpu_custom_call.1} parent=27 // pred_region
          %s272 = sand.u32 %s80, 1
          %s273 = scalar_lea.sflag [#allocation7], %s272
          %s274 = sand.u32 %s80, 1
          %s275 = smul.addr %s274, 4
          %s276 = scalar_lea.vmem [#allocation6], %s275
          %s277 = ssub.s32 %s30, 1
          %p278 = scmp.gt.s32.totalorder %s277, 0
          %s279 = scalar_select %p278, %s277, 0
          %s281 = ssub.s32 64, 64
          %282 = vsyncadd %s273, %s281
          %s283 = smul.addr %s29, 2
          %s284 = sadd.s32 %s279, %s283
          %s285 = smul.addr %s284, 64
          %s286 = scalar_lea.hbm %s1, %s285
          %s288 = sshll.u32 %s276, 4
          %s289 = int_to_ptr.vmem [resolvable:$true] %s288
          %291 = dma.hbm_to_vmem [thread:$0]  %s286, 64, %s289, %s273
        $region36: #{tpu_custom_call.1} parent=27 // pred_fallthru
          _
        // Predicated region
        $region37: #{tpu_custom_call.1} parent=27 // pred_check
          %p292 = pneg %p124
        $region38: #{tpu_custom_call.1} parent=27 // pred_check_branch
          %294 = sbr.rel (%p292) target = $region40
        $region39: #{tpu_custom_call.1} parent=27 // pred_region
          %s295 = sadd.s32 %s30, 1
          %p296 = scmp.lt.s32.totalorder %s295, 1
          %s297 = scalar_select %p296, %s295, 1
          %p298 = scmp.lt.s32.totalorder %s29, 1
          %s299 = scalar_select %p298, %s29, 1
          %p300 = scmp.lt.s32.totalorder %s297, 1
          %s301 = scalar_select %p300, %s297, 1
          %s302 = smul.addr %s299, 2
          %s303 = sadd.s32 %s301, %s302
          %s304 = smul.addr %s303, 4
          %s305 = scalar_lea.vmem %s2, %s304
          %s306 = sadd.s32 %s30, 1
          %p307 = scmp.lt.s32.totalorder %s306, 1
          %s308 = scalar_select %p307, %s306, 1
        $region40: #{tpu_custom_call.1} parent=27 // pred_fallthru
          _
      $region28: #{tpu_custom_call.1} parent=5 // pred_fallthru
        _
      %p309 = scmp.le.s32.totalorder 1, %s22
      %p310 = scmp.lt.s32.totalorder %s22, 5
      %p311 = pnand %p309, %p310
      %p312 = pneg %p311
      // Predicated region
      $region41: #{tpu_custom_call.1} parent=5 // pred_check
        _
      $region42: #{tpu_custom_call.1} parent=5 // pred_check_branch
        %314 = sbr.rel (%p311) target = $region44
      $region43: #{tpu_custom_call.1} parent=5 // pred_region
        %s315 = ssub.s32 %s22, 1
        %s316 = sand.u32 %s49, 1
        %s317 = scalar_lea.sflag [#allocation4], %s316
        %s318 = sand.u32 %s49, 1
        %s319 = smul.addr %s318, 4
        %s320 = scalar_lea.vmem [#allocation3], %s319
        // Predicated region
        $region45: #{tpu_custom_call.1} parent=43 // pred_check
          %p321 = pneg %p62
        $region46: #{tpu_custom_call.1} parent=43 // pred_check_branch
          %323 = sbr.rel (%p321) target = $region48
        $region47: #{tpu_custom_call.1} parent=43 // pred_region
          %324 = dma.done %s317, 64
        $region48: #{tpu_custom_call.1} parent=43 // pred_fallthru
          _
        %s325 = sand.u32 %s83, 1
        %s326 = scalar_lea.sflag [#allocation7], %s325
        %s327 = sand.u32 %s83, 1
        %s328 = smul.addr %s327, 4
        %s329 = scalar_lea.vmem [#allocation6], %s328
        // Predicated region
        $region49: #{tpu_custom_call.1} parent=43 // pred_check
          %p330 = pneg %p96
        $region50: #{tpu_custom_call.1} parent=43 // pred_check_branch
          %332 = sbr.rel (%p330) target = $region52
        $region51: #{tpu_custom_call.1} parent=43 // pred_region
          %333 = dma.done %s326, 64
        $region52: #{tpu_custom_call.1} parent=43 // pred_fallthru
          _
        %s334 = sand.u32 %s49, 1
        %s335 = scalar_lea.sflag [#allocation4], %s334
        %s336 = sand.u32 %s49, 1
        %s337 = smul.addr %s336, 4
        %s338 = scalar_lea.vmem [#allocation3], %s337
        %p339 = pneg %p62
        %p340 = pneg %p59
        %s341 = sand.u32 %s83, 1
        %s342 = scalar_lea.sflag [#allocation7], %s341
        %s343 = sand.u32 %s83, 1
        %s344 = smul.addr %s343, 4
        %s345 = scalar_lea.vmem [#allocation6], %s344
        %p346 = pneg %p96
        %p347 = pneg %p93
        %s348 = sadd.s32 %s32, 1
        %p349 = scmp.lt.s32.totalorder %s348, 1
        %s350 = scalar_select %p349, %s348, 1
        %p351 = scmp.lt.s32.totalorder %s31, 1
        %s352 = scalar_select %p351, %s31, 1
        %p353 = scmp.lt.s32.totalorder %s350, 1
        %s354 = scalar_select %p353, %s350, 1
        %s355 = smul.addr %s352, 2
        %s356 = sadd.s32 %s354, %s355
        %s357 = smul.addr %s356, 4
        %s358 = scalar_lea.vmem %s2, %s357
        %p359 = pneg %p130
        %p360 = pneg %p127
        %p361 = pneg %p151
        %p362 = pneg %p148
        %p363 = pneg %p172
        %p364 = pneg %p169
        %p365 = pneg %p193
        %p366 = pneg %p190
        %p367 = pneg %p221
        %p368 = pneg %p218
        %s369 = sand.u32 %s208, 1
        %s370 = scalar_lea.sflag [#allocation5], %s369
        %s371 = sand.u32 %s208, 1
        %s372 = smul.addr %s371, 4
        %s373 = scalar_lea.vmem [#allocation8], %s372
        %s374 = ssub.s32 %s32, 1
        %p375 = scmp.gt.s32.totalorder %s374, 0
        %s376 = scalar_select %p375, %s374, 0
        %s377 = sadd.s32 %s32, 1
        %p378 = scmp.lt.s32.totalorder %s377, 1
        %s379 = scalar_select %p378, %s377, 1
        %p380 = scmp.lt.s32.totalorder %s31, 1
        %s381 = scalar_select %p380, %s31, 1
        %p382 = scmp.lt.s32.totalorder %s379, 1
        %s383 = scalar_select %p382, %s379, 1
        %s384 = smul.addr %s381, 2
        %s385 = sadd.s32 %s383, %s384
        %s386 = smul.addr %s385, 4
        %s387 = scalar_lea.vmem %s2, %s386
        %s388 = sadd.s32 %s32, 1
        %p389 = scmp.lt.s32.totalorder %s388, 1
        %s390 = scalar_select %p389, %s388, 1
        %v391 = vld [vmem:[%s320] sm:$0xf]
        %v392 = vld [vmem:[%s329] sm:$0xf]
        %v393 = vld [vmem:[%s387] sm:$0xf]
        %p394 = scmp.eq.s32.totalorder %s32, 0
        %s395 = scalar_select %p394, -inf, inf
        %p396 = scmp.eq.s32.totalorder %s32, 1
        %s397 = scalar_select %p396, -inf, inf
        %v398 = vstv %s395
        %v399 = vmin.f32 %v392, %v398
        %v400 = vstv %s397
        %v401 = vmin.f32 %v393, %v400
        %403 = vrot.lane.b32.xlu0 %v399, 16
        %v404 = vpop.permute.xlu0 %403
        %407 = vrot.lane.b32.xlu0 %v391, 16
        %v408 = vpop.permute.xlu0 %407
        %vm410 = vcmask 130048
        %v411 = vsel %vm410, %v404, %v408
        %412 = vrot.lane.b32.xlu0 %v391, 112
        %v413 = vpop.permute.xlu0 %412
        %416 = vrot.lane.b32.xlu0 %v401, 112
        %v417 = vpop.permute.xlu0 %416
        %vm419 = vcmask 916480
        %v420 = vsel %vm419, %v413, %v417
        %v421 = vmax.f32 %v411, %v420
        %v422 = vmax.f32 %v391, %v421
        %v423 = vld [vmem:[%s5] sm:$0x1]
        %425 = vrot.lane.b32.xlu0 %v422, 127
        %v426 = vpop.permute.xlu0 %425
        %428 = vrot.lane.b32.xlu0 %v422, 1
        %v429 = vpop.permute.xlu0 %428
        %vm431 = vcmp.lt.s32.totalorder %v423, 15
        %v432 = vsel %vm431, 1, 0
        %v433 = vlaneseq
        %v434 = vshrl.u32 %v433, 7
        %v435 = vsub.s32 0, %v434
        %v436 = vrot.slane %v432, %v435
        %vm437 = vcmp.eq.s32.totalorder %v436, 1
        %v438 = vsel %vm437, %v426, -inf
        %v439 = vmax.f32 %v422, %v438
        %vm440 = vcmp.ge.s32.totalorder %v423, 1
        %v441 = vsel %vm440, 1, 0
        %v442 = vlaneseq
        %v443 = vshrl.u32 %v442, 7
        %v444 = vsub.s32 0, %v443
        %v445 = vrot.slane %v441, %v444
        %vm446 = vcmp.eq.s32.totalorder %v445, 1
        %v447 = vsel %vm446, %v429, -inf
        %v448 = vmax.f32 %v439, %v447
        %v449 = vsub.f32 %v391, %v448
        %v450 = vld [vmem:[%s3] sm:$0xf]
        %452 = vset.pattern.permute.xlu0 0
        %453 = vperm.xlu0 %452, %v450
        %v454 = vpop.permute.xlu0 %453
        %v456 = vmul.f32 %v449, %v454
        %vm457 = vcmask 1043456
        %v458 = vsel %vm457, %v456, 0.0
        %v459 = vrot.slane %v458, 4
        %v460 = vadd.f32 %v458, %v459
        %v461 = vrot.slane %v460, 2
        %v462 = vadd.f32 %v460, %v461
        %v463 = vrot.slane %v462, 1
        %v464 = vadd.f32 %v462, %v463
        %s465 = sld [smem:[#allocation2]]
        %v466 = vstv %s465
        %v467 = vadd.f32 %v464, %v466
        %v468 = vmul.f32 %v467, %v467
        %v469 = vsub.f32 0.0, %v468
        %v470 = vxor.u32 %v469, 2147483648
        %v471 = vmul.f32 %v470, 1.442695
        %v472 = vpow.pop %v471
        %v473 = vadd.f32 %v472, 1.0
        %v474 = vrcp.pop %v473
        %v475 = vmul.f32 1.0, %v474
        %v476 = vadd.f32 %v391, %v448
        %v477 = vmul.f32 %v475, %v476
        %v478 = vsub.f32 %v477, %v391
        %479 = vst [vmem:[%s373] sm:$0xf] %v478
        %s480 = sand.u32 %s208, 1
        %s481 = scalar_lea.sflag [#allocation5], %s480
        %s482 = sand.u32 %s208, 1
        %s483 = smul.addr %s482, 4
        %s484 = scalar_lea.vmem [#allocation8], %s483
        // Predicated region
        $region53: #{tpu_custom_call.1} parent=43 // pred_check
          %p485 = pneg %p218
        $region54: #{tpu_custom_call.1} parent=43 // pred_check_branch
          %487 = sbr.rel (%p485) target = $region56
        $region55: #{tpu_custom_call.1} parent=43 // pred_region
          %s489 = ssub.s32 64, 64
          %490 = vsyncadd %s481, %s489
          %s491 = smul.addr %s31, 2
          %s492 = sadd.s32 %s32, %s491
          %s493 = smul.addr %s492, 64
          %s494 = scalar_lea.hbm %s6, %s493
          %s496 = sshll.u32 %s484, 4
          %s497 = int_to_ptr.vmem [resolvable:$true] %s496
          %499 = dma.vmem_to_hbm [thread:$0]  %s497, 64, %s494, %s481
        $region56: #{tpu_custom_call.1} parent=43 // pred_fallthru
          _
      $region44: #{tpu_custom_call.1} parent=5 // pred_fallthru
        _
      %p500 = scmp.le.s32.totalorder 2, %s22
      // Predicated region
      $region57: #{tpu_custom_call.1} parent=5 // pred_check
        %p501 = pneg %p500
      $region58: #{tpu_custom_call.1} parent=5 // pred_check_branch
        %503 = sbr.rel (%p501) target = $region60
      $region59: #{tpu_custom_call.1} parent=5 // pred_region
        %s504 = ssub.s32 %s22, 2
        // Predicated region
        $region61: #{tpu_custom_call.1} parent=59 // pred_check
          %p505 = pneg %p224
        $region62: #{tpu_custom_call.1} parent=59 // pred_check_branch
          %507 = sbr.rel (%p505) target = $region64
        $region63: #{tpu_custom_call.1} parent=59 // pred_region
          %s508 = sand.u32 %s209, 1
          %s509 = scalar_lea.sflag [#allocation5], %s508
          %s510 = sand.u32 %s209, 1
          %s511 = smul.addr %s510, 4
          %s512 = scalar_lea.vmem [#allocation8], %s511
          %513 = dma.done %s509, 64
        $region64: #{tpu_custom_call.1} parent=59 // pred_fallthru
          _
      $region60: #{tpu_custom_call.1} parent=5 // pred_fallthru
        _
    $region6: #{tpu_custom_call.1} parent=1 // loop_footer
      %s26 = sadd.s32 1, %s22
    $region7: #{tpu_custom_call.1} parent=1 // loop_footer_branch
      %21 = sbr.rel target = $region3
    $region8: #{tpu_custom_call.1} parent=1 // loop_exit
      _
    %514 = vsyncpa [#allocation4], 1
    %s515 = scalar_lea.sflag [#allocation4], 1
    %516 = vsyncpa %s515, 1
    %517 = vsyncpa [#allocation7], 1
    %s518 = scalar_lea.sflag [#allocation7], 1
    %519 = vsyncpa %s518, 1
    %520 = vsyncpa [#allocation5], 1
    %s521 = scalar_lea.sflag [#allocation5], 1
    %522 = vsyncpa %s521, 1

</llo_original>
